<compile_context>
chip_gen: v6e
topology: v6e:2x2x1
jax: 0.10.0
libtpu: 0.0.40
codegen_flags: <defaults>
</compile_context>

<pallas_src>
import functools

import jax
import jax.numpy as jnp
from jax.experimental import pallas as pl
from jax.experimental.pallas import tpu as pltpu

_NEG = -1e30  # plain Python float -> inlined as a literal, never a captured const


def _round_up(x, m):
    return ((x + m - 1) // m) * m


def _cdiv(a, b):
    return (a + b - 1) // b


def _lse_kernel(pred_ref, out_ref, m_ref, l_ref, *, c_total, c_ragged):
    """Per-row streaming logsumexp; class tiles are grid axis 1 ('arbitrary')."""
    j = pl.program_id(1)
    tn, tc = pred_ref.shape

    @pl.when(j == 0)
    def _():
        m_ref[...] = jnp.full_like(m_ref, _NEG)  # running max
        l_ref[...] = jnp.zeros_like(l_ref)       # running sum of exp(x - max)

    def online_update(x):
        logits = x.astype(jnp.float32)                       # (tn, tc)
        tile_max = jnp.max(logits, axis=-1, keepdims=True)   # (tn, 1)
        m_prev = m_ref[...]
        m_new = jnp.maximum(m_prev, tile_max)
        alpha = jnp.exp(m_prev - m_new)
        l_ref[...] = alpha * l_ref[...] + jnp.sum(
            jnp.exp(logits - m_new), axis=-1, keepdims=True)
        m_ref[...] = m_new

    if not c_ragged:
        # C is a multiple of the class tile: no padded lanes, no mask at all.
        online_update(pred_ref[...])
    else:
        last_j = pl.num_programs(1) - 1

        @pl.when(j < last_j)
        def _():
            online_update(pred_ref[...])

        @pl.when(j == last_j)
        def _():
            # Only the last class tile has padded lanes; mask them (in the
            # packed input dtype, before the f32 upcast) with a large negative
            # so they never perturb the running max / sum.
            c_rem = c_total - j * tc
            lane = jax.lax.broadcasted_iota(jnp.int32, (tn, tc), 1)
            online_update(jnp.where(lane < c_rem, pred_ref[...], _NEG))

    @pl.when(j == pl.num_programs(1) - 1)
    def _():
        out_ref[...] = m_ref[...] + jnp.log(l_ref[...])      # (tn, 1) row lse


def cross_entropy_loss(pred, target, *, tn_max=256, tc_max=4096):
    """pred: (N, C) float logits; target: (N,) int class ids -> scalar f32 loss.

    tn_max must be a multiple of 8, tc_max a multiple of 128 (only used when
    the corresponding axis is actually tiled).
    """
    n, c = pred.shape

    # Batch tile: multiple of 16 when tiled, and >=2 tiles whenever N > 16 so
    # the 'parallel' batch axis can be sharded across both v7x TensorCores.
    if n <= 16 and n <= tn_max:
        tn = n                                   # single tile, full extent
    elif n <= tn_max:
        tn = min(tn_max, _round_up(_cdiv(n, 2), 16))
    else:
        tn = tn_max
    nt = _cdiv(n, tn)

    # Class tile: full extent if it fits, else tc_max (online logsumexp).
    tc = c if c <= tc_max else tc_max
    ct = _cdiv(c, tc)

    kernel = functools.partial(_lse_kernel, c_total=c, c_ragged=(c % tc != 0))

    lse_padded = pl.pallas_call(
        kernel,
        out_shape=jax.ShapeDtypeStruct((nt * tn, 1), jnp.float32),
        grid_spec=pltpu.PrefetchScalarGridSpec(
            num_scalar_prefetch=0,
            grid=(nt, ct),
            in_specs=[pl.BlockSpec((tn, tc), lambda i, j: (i, j))],  # logits
            out_specs=pl.BlockSpec((tn, 1), lambda i, j: (i, 0)),    # row lse
            scratch_shapes=[
                pltpu.VMEM((tn, 1), jnp.float32),   # running max m
                pltpu.VMEM((tn, 1), jnp.float32),   # running sum l
            ],
        ),
        compiler_params=pltpu.CompilerParams(
            dimension_semantics=("parallel", "arbitrary"),
            vmem_limit_bytes=32 * 1024 * 1024,
        ),
    )(pred)

    lse = lse_padded[:n, 0]
    # Target-logit gather: N elements, done once in the wrapper (cheap XLA
    # gather) instead of a per-tile compare/select/reduce inside the kernel.
    picked = jnp.take_along_axis(pred, target.astype(jnp.int32)[:, None], axis=1)
    return jnp.mean(lse - picked[:, 0].astype(jnp.float32))


class Loss:
    """JAX/Pallas equivalent of the PyTorch Loss module (nn.CrossEntropyLoss)."""

    def __call__(self, pred, target):
        return cross_entropy_loss(pred, target)


if __name__ == "__main__":
    key = jax.random.PRNGKey(0)
    k1, k2, k3, k4 = jax.random.split(key, 4)

    # Case 1: small single-tile f32.
    N, C = 8, 32
    pred = jax.random.normal(k1, (N, C), dtype=jnp.float32)
    target = jax.random.randint(k2, (N,), 0, C, dtype=jnp.int32)

    loss = Loss()(pred, target)
    jax.block_until_ready(loss)

    logp = jax.nn.log_softmax(pred, axis=-1)
    ref = -jnp.mean(logp[jnp.arange(N), target])
    assert jnp.allclose(loss, ref, atol=1e-5, rtol=1e-5), (loss, ref)

    # Case 2: bf16 logits with ragged N and C -> batch tiling (padded rows),
    # online logsumexp across class tiles, and last-tile lane masking.
    N2, C2 = 10, 200
    pred2 = jax.random.normal(k3, (N2, C2)).astype(jnp.bfloat16)
    target2 = jax.random.randint(k4, (N2,), 0, C2, dtype=jnp.int32)
    loss2 = cross_entropy_loss(pred2, target2, tn_max=8, tc_max=128)
    jax.block_until_ready(loss2)

    logp2 = jax.nn.log_softmax(pred2.astype(jnp.float32), axis=-1)
    ref2 = -jnp.mean(logp2[jnp.arange(N2), target2])
    assert jnp.allclose(loss2, ref2, atol=1e-4, rtol=1e-4), (loss2, ref2)

    print("KERNEL_OK")
</pallas_src>

<mosaic_0001>
module attributes {stable_mosaic.version = 11 : i64} {
  func.func @_lse_kernel(%arg0: i32, %arg1: i32, %arg2: memref<8x32xf32, #tpu.memory_space<vmem>>, %arg3: memref<8x1xf32, #tpu.memory_space<vmem>>, %arg4: memref<8x1xf32, #tpu.memory_space<vmem>>, %arg5: memref<8x1xf32, #tpu.memory_space<vmem>>) attributes {dimension_semantics = [#tpu.dimension_semantics<parallel>, #tpu.dimension_semantics<arbitrary>], iteration_bounds = array<i64: 1, 1>, scalar_prefetch = 0 : i64, scratch_operands = 2 : i64, tpu.core_type = #tpu.core_type<tc>, window_params = [{transform_indices = @transform_0, window_bounds = array<i64: 8, 32>}, {transform_indices = @transform_1, window_bounds = array<i64: 8, 1>}]} {
    %c0_i32 = arith.constant 0 : i32
    %0 = arith.cmpi eq, %arg1, %c0_i32 : i32
    %1 = arith.extui %0 : i1 to i32
    %c0_i32_0 = arith.constant 0 : i32
    %2 = arith.cmpi ne, %1, %c0_i32_0 : i32
    scf.if %2 {
      %cst_13 = arith.constant -1.000000e+30 : f32
      %23 = vector.broadcast %cst_13 : f32 to vector<8x1xf32>
      %c0_14 = arith.constant 0 : index
      %c0_15 = arith.constant 0 : index
      %24 = vector.load %arg4[%c0_14, %c0_15] : memref<8x1xf32, #tpu.memory_space<vmem>>, vector<8x1xf32>
      tpu.vector_store %arg4[%c0_14, %c0_15], %23 {strides = array<i32>} : memref<8x1xf32, #tpu.memory_space<vmem>>, vector<8x1xf32>,
      %cst_16 = arith.constant 0.000000e+00 : f32
      %25 = vector.broadcast %cst_16 : f32 to vector<8x1xf32>
      %c0_17 = arith.constant 0 : index
      %c0_18 = arith.constant 0 : index
      %26 = vector.load %arg5[%c0_17, %c0_18] : memref<8x1xf32, #tpu.memory_space<vmem>>, vector<8x1xf32>
      tpu.vector_store %arg5[%c0_17, %c0_18], %25 {strides = array<i32>} : memref<8x1xf32, #tpu.memory_space<vmem>>, vector<8x1xf32>,
    } else {
    }
    %c0 = arith.constant 0 : index
    %c0_1 = arith.constant 0 : index
    %3 = vector.load %arg2[%c0, %c0_1] : memref<8x32xf32, #tpu.memory_space<vmem>>, vector<8x32xf32>
    %cst = arith.constant dense<0xFF800000> : vector<8xf32>
    %4 = vector.multi_reduction <maximumf>, %3, %cst [1] : vector<8x32xf32> to vector<8xf32>
    %5 = vector.shape_cast %4 : vector<8xf32> to vector<8x1xf32>
    %c0_2 = arith.constant 0 : index
    %c0_3 = arith.constant 0 : index
    %6 = vector.load %arg4[%c0_2, %c0_3] : memref<8x1xf32, #tpu.memory_space<vmem>>, vector<8x1xf32>
    %7 = arith.maximumf %6, %5 : vector<8x1xf32>
    %8 = arith.subf %6, %7 : vector<8x1xf32>
    %9 = math.exp %8 : vector<8x1xf32>
    %c0_4 = arith.constant 0 : index
    %c0_5 = arith.constant 0 : index
    %10 = vector.load %arg5[%c0_4, %c0_5] : memref<8x1xf32, #tpu.memory_space<vmem>>, vector<8x1xf32>
    %11 = arith.mulf %9, %10 : vector<8x1xf32>
    %12 = vector.broadcast %7 : vector<8x1xf32> to vector<8x32xf32>
    %13 = arith.subf %3, %12 : vector<8x32xf32>
    %14 = math.exp %13 : vector<8x32xf32>
    %cst_6 = arith.constant dense<0.000000e+00> : vector<8xf32>
    %15 = vector.multi_reduction <add>, %14, %cst_6 [1] : vector<8x32xf32> to vector<8xf32>
    %16 = vector.shape_cast %15 : vector<8xf32> to vector<8x1xf32>
    %17 = arith.addf %11, %16 : vector<8x1xf32>
    %c0_7 = arith.constant 0 : index
    %c0_8 = arith.constant 0 : index
    %18 = vector.load %arg5[%c0_7, %c0_8] : memref<8x1xf32, #tpu.memory_space<vmem>>, vector<8x1xf32>
    tpu.vector_store %arg5[%c0_7, %c0_8], %17 {strides = array<i32>} : memref<8x1xf32, #tpu.memory_space<vmem>>, vector<8x1xf32>,
    %c0_9 = arith.constant 0 : index
    %c0_10 = arith.constant 0 : index
    %19 = vector.load %arg4[%c0_9, %c0_10] : memref<8x1xf32, #tpu.memory_space<vmem>>, vector<8x1xf32>
    tpu.vector_store %arg4[%c0_9, %c0_10], %7 {strides = array<i32>} : memref<8x1xf32, #tpu.memory_space<vmem>>, vector<8x1xf32>,
    %c0_i32_11 = arith.constant 0 : i32
    %20 = arith.cmpi eq, %arg1, %c0_i32_11 : i32
    %21 = arith.extui %20 : i1 to i32
    %c0_i32_12 = arith.constant 0 : i32
    %22 = arith.cmpi ne, %21, %c0_i32_12 : i32
    scf.if %22 {
      %c0_13 = arith.constant 0 : index
      %c0_14 = arith.constant 0 : index
      %23 = vector.load %arg4[%c0_13, %c0_14] : memref<8x1xf32, #tpu.memory_space<vmem>>, vector<8x1xf32>
      %c0_15 = arith.constant 0 : index
      %c0_16 = arith.constant 0 : index
      %24 = vector.load %arg5[%c0_15, %c0_16] : memref<8x1xf32, #tpu.memory_space<vmem>>, vector<8x1xf32>
      %25 = math.log %24 : vector<8x1xf32>
      %26 = arith.addf %23, %25 : vector<8x1xf32>
      %c0_17 = arith.constant 0 : index
      %c0_18 = arith.constant 0 : index
      %27 = vector.load %arg3[%c0_17, %c0_18] : memref<8x1xf32, #tpu.memory_space<vmem>>, vector<8x1xf32>
      tpu.vector_store %arg3[%c0_17, %c0_18], %26 {strides = array<i32>} : memref<8x1xf32, #tpu.memory_space<vmem>>, vector<8x1xf32>,
    } else {
    }
    return
  }
  func.func @transform_0(%arg0: i32, %arg1: i32) -> (i32, i32) {
    %c0_i32 = arith.constant 0 : i32
    return %arg0, %arg1 : i32, i32
  }
  func.func @transform_1(%arg0: i32, %arg1: i32) -> (i32, i32) {
    %c0_i32 = arith.constant 0 : i32
    %c0_i32_0 = arith.constant 0 : i32
    return %arg0, %c0_i32 : i32, i32
  }
}

</mosaic_0001>

<llo_original>
// kernel: tpu_custom_call.1
$region0: #{tpu_custom_call.1}
  #allocation0 [shape = 'u32[]', space=smem, size = 0x4, offset = 0x4, fixed_abs, tag = 'smem constant byte address 0x4 - core index']
  #allocation1 [shape = 'u32[144,128]{1,0:T(1,128)}', space=vmem, size = 0x12000, scoped, tag = 'internal scratch']
  #allocation2 [shape = 'f32[8,1]{1,0:T(8,128)}', space=vmem, size = 0x1000, scoped, tag = 'scratch operand']
  #allocation3 [shape = 'f32[8,1]{1,0:T(8,128)}', space=vmem, size = 0x1000, scoped, tag = 'scratch operand']
  %s0 = inlined_call_operand.hbm [shape: f32[8,32], index: 0, kind: input, shape index: {}]
  %s1 = inlined_call_operand.vmem [shape: f32[8,1], index: 1, kind: output, shape index: {}]
  %s2 = sld [smem:[#allocation0]]
  $region26: #{tpu_custom_call.1} parent=0
    _
  %s4 = ssub.s32 1, %s2
  %s5 = scalar_select 0, %s4, %s2
  $region1: #{tpu_custom_call.1} parent=0
    #allocation4 [shape = 'u8[4096]{0}', space=vmem, size = 0x1000, scoped, tag = 'input window, operand 0, single buffered']
    #allocation5 [shape = 's32[1]{0}', space=sflag, size = 0x4, scoped, tag = 'scoped memory for tpu_custom_call.1']
    %6 = vsyncpa [#allocation5], 0
    // Predicated region
    $region2: #{tpu_custom_call.1} parent=1 // pred_check
      _
    $region3: #{tpu_custom_call.1} parent=1 // pred_check_branch
      %8 = sbr.rel (0) target = $region5
    $region4: #{tpu_custom_call.1} parent=1 // pred_region
      %s10 = ssub.s32 128, 128
      %11 = vsyncadd [#allocation5], %s10
      %s13 = sshll.u32 [#allocation4], 4
      %s14 = int_to_ptr.vmem [resolvable:$true] %s13
      %16 = dma.hbm_to_vmem [thread:$0]  %s0, 128, %s14, [#allocation5]
    $region5: #{tpu_custom_call.1} parent=1 // pred_fallthru
      _
    // Predicated region
    $region6: #{tpu_custom_call.1} parent=1 // pred_check
      _
    $region7: #{tpu_custom_call.1} parent=1 // pred_check_branch
      %18 = sbr.rel (0) target = $region9
    $region8: #{tpu_custom_call.1} parent=1 // pred_region
      %19 = dma.done [#allocation5], 128
    $region9: #{tpu_custom_call.1} parent=1 // pred_fallthru
      _
    %p20 = scmp.eq.s32.totalorder 0, 0
    // Predicated region
    $region10: #{tpu_custom_call.1} parent=1 // pred_check
      %p21 = pneg %p20
    $region11: #{tpu_custom_call.1} parent=1 // pred_check_branch
      %23 = sbr.rel (%p21) target = $region13
    $region12: #{tpu_custom_call.1} parent=1 // pred_region
      %vm24 = vcmask 7168
      %25 = vst.msk [vmem:[#allocation2] sm:$0xff] %vm24, -1e+30
      %26 = vst.msk [vmem:[#allocation3] sm:$0xff] %vm24, 0.0
    $region13: #{tpu_custom_call.1} parent=1 // pred_fallthru
      _
    %v27 = vld [vmem:[#allocation4] sm:$0xff]
    %vm28 = vcmask 261120
    %v29 = vsel %vm28, %v27, -inf
    %30 = vmax.xlane.f32.xlu0 %v29
    %v31 = vpop.xlane.xlu0 %30
    %v32 = vld [vmem:[#allocation2] sm:$0xff]
    %v33 = vmax.f32 %v32, %v31
    %v34 = vsub.f32 %v32, %v33
    %v35 = vmul.f32 %v34, 1.442695
    %v36 = vpow.pop %v35
    %v37 = vld [vmem:[#allocation3] sm:$0xff]
    %v38 = vmul.f32 %v36, %v37
    %40 = vset.pattern.permute.xlu0 0
    %41 = vperm.xlu0 %40, %v33
    %v42 = vpop.permute.xlu0 %41
    %v44 = vsub.f32 %v27, %v42
    %v45 = vmul.f32 %v44, 1.442695
    %v46 = vpow.pop %v45
    %v47 = vsel %vm28, %v46, 0.0
    %48 = vadd.xlane.f32.xlu0 %v47
    %v49 = vpop.xlane.xlu0 %48
    %v50 = vadd.f32 %v38, %v49
    %vm51 = vcmask 7168
    %52 = vst.msk [vmem:[#allocation3] sm:$0xff] %vm51, %v50
    %53 = vst.msk [vmem:[#allocation2] sm:$0xff] %vm51, %v33
    // Predicated region
    $region14: #{tpu_custom_call.1} parent=1 // pred_check
      %p54 = pneg %p20
    $region15: #{tpu_custom_call.1} parent=1 // pred_check_branch
      %56 = sbr.rel (%p54) target = $region17
    $region16: #{tpu_custom_call.1} parent=1 // pred_region
      %v57 = vld [vmem:[#allocation2] sm:$0xff]
      %v58 = vld [vmem:[#allocation3] sm:$0xff]
      %v59 = vlog2.pop %v58
      %v60 = vmul.f32 %v59, 0.6931472
      %v61 = vadd.f32 %v57, %v60
      %62 = vst.msk [vmem:[%s1] sm:$0xff] %vm51, %v61
    $region17: #{tpu_custom_call.1} parent=1 // pred_fallthru
      _
    // Predicated region
    $region18: #{tpu_custom_call.1} parent=1 // pred_check
      _
    $region19: #{tpu_custom_call.1} parent=1 // pred_check_branch
      %64 = sbr.rel (0) target = $region21
    $region20: #{tpu_custom_call.1} parent=1 // pred_region
      _
    $region21: #{tpu_custom_call.1} parent=1 // pred_fallthru
      _
    // Predicated region
    $region22: #{tpu_custom_call.1} parent=1 // pred_check
      _
    $region23: #{tpu_custom_call.1} parent=1 // pred_check_branch
      %66 = sbr.rel (0) target = $region25
    $region24: #{tpu_custom_call.1} parent=1 // pred_region
      _
    $region25: #{tpu_custom_call.1} parent=1 // pred_fallthru
      _
    %67 = vsyncpa [#allocation5], 1

</llo_original>
